<compile_context>
chip_gen: v7x
topology: tpu7x:2x2x1
jax: 0.10.0
libtpu: 0.0.40
codegen_flags: <defaults>
</compile_context>

<pallas_src>
import functools
import typing as tp

import jax
import jax.numpy as jnp
from jax.experimental import pallas as pl
from jax.experimental.pallas import tpu as pltpu


# ---------------------------------------------------------------------------
# Pallas kernel: VMEM-resident table, in-kernel row gather  out[i] = table[ids[i]]
# ---------------------------------------------------------------------------
def _embedding_gather_kernel(ids_ref, table_ref, out_ref):
    # ids_ref:   SMEM (B_pad,) int32 gather indices (already clamped in-bounds).
    # table_ref: VMEM (V, D) full embedding table (single bulk DMA by pallas_call).
    # out_ref:   VMEM (B_pad, D) gathered rows.
    b_pad = out_ref.shape[0]
    for i in range(b_pad):                       # B_pad is a small static constant
        idx = ids_ref[i]                         # SMEM scalar load
        out_ref[pl.ds(i, 1), :] = table_ref[pl.ds(idx, 1), :]   # dynamic-sublane row copy


def embedding_gather(ids_pad: jax.Array, table: jax.Array) -> jax.Array:
    """Row gather on a VMEM-resident table: table[ids_pad] -> [B_pad, D].

    ids_pad must be int32, in [0, V), with B_pad a multiple of 8.
    """
    b_pad = ids_pad.shape[0]
    V, D = table.shape
    itemsize = jnp.dtype(table.dtype).itemsize
    return pl.pallas_call(
        _embedding_gather_kernel,
        out_shape=jax.ShapeDtypeStruct((b_pad, D), table.dtype),
        # No grid: kernel body runs once; full arrays are the blocks.
        in_specs=[
            pl.BlockSpec(memory_space=pltpu.MemorySpace.SMEM),   # ids (B_pad,)
            pl.BlockSpec(memory_space=pltpu.MemorySpace.VMEM),   # table (V, D), one bulk DMA
        ],
        out_specs=pl.BlockSpec(memory_space=pltpu.MemorySpace.VMEM),
        cost_estimate=pl.CostEstimate(
            flops=0,
            transcendentals=0,
            # table read + gathered-rows write + ids read
            bytes_accessed=int(V * D * itemsize + b_pad * D * itemsize + b_pad * 4),
        ),
    )(ids_pad, table)


# ---------------------------------------------------------------------------
# Whole forward path under one jit: clamp -> pad -> Pallas gather -> slice/mask
# ---------------------------------------------------------------------------
@functools.partial(jax.jit, static_argnums=(2, 3))
def _int_conditioner_forward(ids, table, min_val, max_val):
    B = ids.shape[0]
    V = table.shape[0]
    # Mirrors `ints.clamp(min_val, max_val)`.
    ids = jnp.clip(ids.astype(jnp.int32), min_val, max_val)
    # PyTorch uses the clamped value directly as the embedding index; with the
    # default min_val=0 that is always within the V = max_val - min_val + 1 rows.
    # Clamp to V-1 defensively so a nonzero min_val cannot become an OOB VMEM read
    # (PyTorch itself would raise an IndexError in that configuration).
    gather_ids = jnp.minimum(ids, V - 1)
    # Pad the batch up to a multiple of 8 sublanes; padded rows gather row 0 and
    # are sliced off below (free layout plumbing under the same jit).
    b_pad = max(8, -(-B // 8) * 8)
    ids_pad = jnp.zeros((b_pad,), jnp.int32).at[:B].set(gather_ids)
    rows = embedding_gather(ids_pad, table)               # (B_pad, D)
    int_embeds = rows[:B][:, None, :]                     # (B, 1, D)  == .unsqueeze(1)
    mask = jnp.ones((B, 1), jnp.float32)                  # torch.ones(B, 1)
    return int_embeds, mask


# ---------------------------------------------------------------------------
# Module classes (forward-pass semantics of the PyTorch module)
# ---------------------------------------------------------------------------
class Conditioner:
    def __init__(self, dim: int, output_dim: int, project_out: bool = False):
        self.dim = dim
        self.output_dim = output_dim
        # IntConditioner builds this with dim == output_dim and project_out=False,
        # so proj_out is nn.Identity() and is never applied in its forward.
        self.proj_out = lambda x: x

    def forward(self, x: tp.Any, device=None) -> tp.Any:
        raise NotImplementedError()


class IntConditioner(Conditioner):
    def __init__(self, output_dim: int, min_val: int = 0, max_val: int = 512,
                 *, key: jax.Array):
        super().__init__(output_dim, output_dim)
        self.min_val = min_val
        self.max_val = max_val
        # nn.Embedding(max_val - min_val + 1, output_dim), default init N(0, 1).
        # TODO(synk): table could be stored bf16 and cast after the gather if
        # downstream numerics allow; kept f32 to match nn.Embedding defaults.
        self.int_embedder = jax.random.normal(
            key, (max_val - min_val + 1, output_dim), jnp.float32)

    def forward(self, ints: tp.List[int], device=None) -> tp.Any:
        # `device` kept for API parity; JAX places arrays on the default TPU backend.
        ids = jnp.asarray(ints, dtype=jnp.int32)
        int_embeds, mask = _int_conditioner_forward(
            ids, self.int_embedder, self.min_val, self.max_val)
        return [int_embeds, mask]

    __call__ = forward


# ---------------------------------------------------------------------------
# Example run
# ---------------------------------------------------------------------------
if __name__ == "__main__":
    OUT_DIM = 128            # lane-dense feature axis (multiple of 128)
    MIN_VAL, MAX_VAL = 0, 512
    B = 4

    key = jax.random.PRNGKey(0)
    cond = IntConditioner(OUT_DIM, MIN_VAL, MAX_VAL, key=key)

    # Includes values outside [0, 512] to exercise the clamp branch.
    ints = [3, 250, 600, -7]
    int_embeds, mask = cond(ints)
    jax.block_until_ready((int_embeds, mask))

    assert int_embeds.shape == (B, 1, OUT_DIM), int_embeds.shape
    assert mask.shape == (B, 1), mask.shape

    # Reference: pure-JAX clamp + take + unsqueeze(1).
    ids_ref = jnp.clip(jnp.asarray(ints, jnp.int32), MIN_VAL, MAX_VAL)
    ref = cond.int_embedder[ids_ref][:, None, :]
    assert jnp.array_equal(int_embeds, ref), "embedding gather mismatch"
    assert jnp.array_equal(mask, jnp.ones((B, 1), jnp.float32)), "mask mismatch"

    print("KERNEL_OK")
</pallas_src>

<mosaic_0001>
module attributes {stable_mosaic.version = 11 : i64} {
  func.func @_embedding_gather_kernel(%arg0: memref<8xi32, #tpu.memory_space<smem>>, %arg1: memref<513x128xf32, #tpu.memory_space<vmem>>, %arg2: memref<8x128xf32, #tpu.memory_space<vmem>>) attributes {dimension_semantics = [], scalar_prefetch = 0 : i64, scratch_operands = 0 : i64, tpu.core_type = #tpu.core_type<tc>} {
    %c0 = arith.constant 0 : index
    %0 = memref.load %arg0[%c0] : memref<8xi32, #tpu.memory_space<smem>>
    %1 = arith.index_cast %0 : i32 to index
    %c0_0 = arith.constant 0 : index
    %2 = vector.load %arg1[%1, %c0_0] : memref<513x128xf32, #tpu.memory_space<vmem>>, vector<1x128xf32>
    %c0_1 = arith.constant 0 : index
    %c0_2 = arith.constant 0 : index
    %3 = vector.load %arg2[%c0_1, %c0_2] : memref<8x128xf32, #tpu.memory_space<vmem>>, vector<1x128xf32>
    tpu.vector_store %arg2[%c0_1, %c0_2], %2 {strides = array<i32>} : memref<8x128xf32, #tpu.memory_space<vmem>>, vector<1x128xf32>,
    %c1 = arith.constant 1 : index
    %4 = memref.load %arg0[%c1] : memref<8xi32, #tpu.memory_space<smem>>
    %5 = arith.index_cast %4 : i32 to index
    %c0_3 = arith.constant 0 : index
    %6 = vector.load %arg1[%5, %c0_3] : memref<513x128xf32, #tpu.memory_space<vmem>>, vector<1x128xf32>
    %c1_4 = arith.constant 1 : index
    %c0_5 = arith.constant 0 : index
    %7 = vector.load %arg2[%c1_4, %c0_5] : memref<8x128xf32, #tpu.memory_space<vmem>>, vector<1x128xf32>
    tpu.vector_store %arg2[%c1_4, %c0_5], %6 {strides = array<i32>} : memref<8x128xf32, #tpu.memory_space<vmem>>, vector<1x128xf32>,
    %c2 = arith.constant 2 : index
    %8 = memref.load %arg0[%c2] : memref<8xi32, #tpu.memory_space<smem>>
    %9 = arith.index_cast %8 : i32 to index
    %c0_6 = arith.constant 0 : index
    %10 = vector.load %arg1[%9, %c0_6] : memref<513x128xf32, #tpu.memory_space<vmem>>, vector<1x128xf32>
    %c2_7 = arith.constant 2 : index
    %c0_8 = arith.constant 0 : index
    %11 = vector.load %arg2[%c2_7, %c0_8] : memref<8x128xf32, #tpu.memory_space<vmem>>, vector<1x128xf32>
    tpu.vector_store %arg2[%c2_7, %c0_8], %10 {strides = array<i32>} : memref<8x128xf32, #tpu.memory_space<vmem>>, vector<1x128xf32>,
    %c3 = arith.constant 3 : index
    %12 = memref.load %arg0[%c3] : memref<8xi32, #tpu.memory_space<smem>>
    %13 = arith.index_cast %12 : i32 to index
    %c0_9 = arith.constant 0 : index
    %14 = vector.load %arg1[%13, %c0_9] : memref<513x128xf32, #tpu.memory_space<vmem>>, vector<1x128xf32>
    %c3_10 = arith.constant 3 : index
    %c0_11 = arith.constant 0 : index
    %15 = vector.load %arg2[%c3_10, %c0_11] : memref<8x128xf32, #tpu.memory_space<vmem>>, vector<1x128xf32>
    tpu.vector_store %arg2[%c3_10, %c0_11], %14 {strides = array<i32>} : memref<8x128xf32, #tpu.memory_space<vmem>>, vector<1x128xf32>,
    %c4 = arith.constant 4 : index
    %16 = memref.load %arg0[%c4] : memref<8xi32, #tpu.memory_space<smem>>
    %17 = arith.index_cast %16 : i32 to index
    %c0_12 = arith.constant 0 : index
    %18 = vector.load %arg1[%17, %c0_12] : memref<513x128xf32, #tpu.memory_space<vmem>>, vector<1x128xf32>
    %c4_13 = arith.constant 4 : index
    %c0_14 = arith.constant 0 : index
    %19 = vector.load %arg2[%c4_13, %c0_14] : memref<8x128xf32, #tpu.memory_space<vmem>>, vector<1x128xf32>
    tpu.vector_store %arg2[%c4_13, %c0_14], %18 {strides = array<i32>} : memref<8x128xf32, #tpu.memory_space<vmem>>, vector<1x128xf32>,
    %c5 = arith.constant 5 : index
    %20 = memref.load %arg0[%c5] : memref<8xi32, #tpu.memory_space<smem>>
    %21 = arith.index_cast %20 : i32 to index
    %c0_15 = arith.constant 0 : index
    %22 = vector.load %arg1[%21, %c0_15] : memref<513x128xf32, #tpu.memory_space<vmem>>, vector<1x128xf32>
    %c5_16 = arith.constant 5 : index
    %c0_17 = arith.constant 0 : index
    %23 = vector.load %arg2[%c5_16, %c0_17] : memref<8x128xf32, #tpu.memory_space<vmem>>, vector<1x128xf32>
    tpu.vector_store %arg2[%c5_16, %c0_17], %22 {strides = array<i32>} : memref<8x128xf32, #tpu.memory_space<vmem>>, vector<1x128xf32>,
    %c6 = arith.constant 6 : index
    %24 = memref.load %arg0[%c6] : memref<8xi32, #tpu.memory_space<smem>>
    %25 = arith.index_cast %24 : i32 to index
    %c0_18 = arith.constant 0 : index
    %26 = vector.load %arg1[%25, %c0_18] : memref<513x128xf32, #tpu.memory_space<vmem>>, vector<1x128xf32>
    %c6_19 = arith.constant 6 : index
    %c0_20 = arith.constant 0 : index
    %27 = vector.load %arg2[%c6_19, %c0_20] : memref<8x128xf32, #tpu.memory_space<vmem>>, vector<1x128xf32>
    tpu.vector_store %arg2[%c6_19, %c0_20], %26 {strides = array<i32>} : memref<8x128xf32, #tpu.memory_space<vmem>>, vector<1x128xf32>,
    %c7 = arith.constant 7 : index
    %28 = memref.load %arg0[%c7] : memref<8xi32, #tpu.memory_space<smem>>
    %29 = arith.index_cast %28 : i32 to index
    %c0_21 = arith.constant 0 : index
    %30 = vector.load %arg1[%29, %c0_21] : memref<513x128xf32, #tpu.memory_space<vmem>>, vector<1x128xf32>
    %c7_22 = arith.constant 7 : index
    %c0_23 = arith.constant 0 : index
    %31 = vector.load %arg2[%c7_22, %c0_23] : memref<8x128xf32, #tpu.memory_space<vmem>>, vector<1x128xf32>
    tpu.vector_store %arg2[%c7_22, %c0_23], %30 {strides = array<i32>} : memref<8x128xf32, #tpu.memory_space<vmem>>, vector<1x128xf32>,
    return
  }
}

</mosaic_0001>

<llo_original>
// kernel: _int_conditioner_forward.1
$region0: #{_int_conditioner_forward.1}
  #allocation0 [shape = 'u32[]', space=smem, size = 0x4, offset = 0x4, fixed_abs, tag = 'smem constant byte address 0x4 - core index']
  #allocation1 [shape = 'u32[144,128]{1,0:T(1,128)}', space=vmem, size = 0x12000, scoped, tag = 'internal scratch']
  %s0 = inlined_call_operand.vmem [shape: s32[8], index: 0, kind: input, shape index: {}]
  %s1 = inlined_call_operand.hbm [shape: f32[513,128], index: 1, kind: input, shape index: {}]
  %s2 = inlined_call_operand.vmem [shape: f32[8,128], index: 2, kind: output, shape index: {}]
  %s3 = sld [smem:[#allocation0]]
  $region26: #{_int_conditioner_forward.1} parent=0
    _
  %s5 = ssub.s32 1, %s3
  %s6 = scalar_select 0, %s5, %s3
  $region1: #{_int_conditioner_forward.1} parent=0
    #allocation2 [shape = 'u8[512]{0}', space=smem, size = 0x200, scoped, tag = 'input window, operand 0, single buffered']
    #allocation3 [shape = 's32[1]{0}', space=sflag, size = 0x4, scoped, tag = 'scoped memory for _int_conditioner_forward.1']
    #allocation4 [shape = 's32[1]{0}', space=sflag, size = 0x4, scoped, tag = 'scoped memory for _int_conditioner_forward.1']
    #allocation5 [shape = 'u8[266240]{0}', space=vmem, size = 0x41000, scoped, tag = 'input window, operand 1, single buffered']
    %7 = vsyncpa [#allocation4], 0
    %8 = vsyncpa [#allocation3], 0
    // Predicated region
    $region2: #{_int_conditioner_forward.1} parent=1 // pred_check
      _
    $region3: #{_int_conditioner_forward.1} parent=1 // pred_check_branch
      %10 = sbr.rel (0) target = $region5
    $region4: #{_int_conditioner_forward.1} parent=1 // pred_region
      %s12 = ssub.s32 16, 16
      %13 = vsyncadd [#allocation4], %s12
      %s15 = sshll.u32 %s0, 4
      %s16 = int_to_ptr.vmem [resolvable:$true] %s15
      %18 = dma.vmem_to_smem %s16, 16, [#allocation2], [#allocation4]
    $region5: #{_int_conditioner_forward.1} parent=1 // pred_fallthru
      _
    // Predicated region
    $region6: #{_int_conditioner_forward.1} parent=1 // pred_check
      _
    $region7: #{_int_conditioner_forward.1} parent=1 // pred_check_branch
      %20 = sbr.rel (0) target = $region9
    $region8: #{_int_conditioner_forward.1} parent=1 // pred_region
      %s22 = ssub.s32 8320, 8320
      %23 = vsyncadd [#allocation3], %s22
      %s24 = sshll.u32 [#allocation5], 4
      %s25 = int_to_ptr.vmem [resolvable:$true] %s24
      %30 = dma.hbm_to_vmem [thread:$0]  %s1, 8320, %s25, [#allocation3], 128, 128, 8
    $region9: #{_int_conditioner_forward.1} parent=1 // pred_fallthru
      _
    // Predicated region
    $region10: #{_int_conditioner_forward.1} parent=1 // pred_check
      _
    $region11: #{_int_conditioner_forward.1} parent=1 // pred_check_branch
      %32 = sbr.rel (0) target = $region13
    $region12: #{_int_conditioner_forward.1} parent=1 // pred_region
      %33 = dma.done [#allocation4], 16
    $region13: #{_int_conditioner_forward.1} parent=1 // pred_fallthru
      _
    // Predicated region
    $region14: #{_int_conditioner_forward.1} parent=1 // pred_check
      _
    $region15: #{_int_conditioner_forward.1} parent=1 // pred_check_branch
      %35 = sbr.rel (0) target = $region17
    $region16: #{_int_conditioner_forward.1} parent=1 // pred_region
      %36 = dma.done [#allocation3], 8320
    $region17: #{_int_conditioner_forward.1} parent=1 // pred_fallthru
      _
    %37 = sfence
    %s38 = sld [smem:[#allocation2]]
    %s39 = scalar_lea.vmem [#allocation5], %s38
    %v40 = vld [vmem:[%s39] sm:$0x1]
    %41 = vst [vmem:[%s2] sm:$0x1] %v40
    %s42 = sld [smem:[#allocation2 + $0x1]]
    %s43 = scalar_lea.vmem [#allocation5], %s42
    %v44 = vld [vmem:[%s43] sm:$0x1]
    %45 = vst [vmem:[%s2 + $0x1] sm:$0x1] %v44
    %s46 = sld [smem:[#allocation2 + $0x2]]
    %s47 = scalar_lea.vmem [#allocation5], %s46
    %v48 = vld [vmem:[%s47] sm:$0x1]
    %49 = vst [vmem:[%s2 + $0x2] sm:$0x1] %v48
    %s50 = sld [smem:[#allocation2 + $0x3]]
    %s51 = scalar_lea.vmem [#allocation5], %s50
    %v52 = vld [vmem:[%s51] sm:$0x1]
    %53 = vst [vmem:[%s2 + $0x3] sm:$0x1] %v52
    %s54 = sld [smem:[#allocation2 + $0x4]]
    %s55 = scalar_lea.vmem [#allocation5], %s54
    %v56 = vld [vmem:[%s55] sm:$0x1]
    %57 = vst [vmem:[%s2 + $0x4] sm:$0x1] %v56
    %s58 = sld [smem:[#allocation2 + $0x5]]
    %s59 = scalar_lea.vmem [#allocation5], %s58
    %v60 = vld [vmem:[%s59] sm:$0x1]
    %61 = vst [vmem:[%s2 + $0x5] sm:$0x1] %v60
    %s62 = sld [smem:[#allocation2 + $0x6]]
    %s63 = scalar_lea.vmem [#allocation5], %s62
    %v64 = vld [vmem:[%s63] sm:$0x1]
    %65 = vst [vmem:[%s2 + $0x6] sm:$0x1] %v64
    %s66 = sld [smem:[#allocation2 + $0x7]]
    %s67 = scalar_lea.vmem [#allocation5], %s66
    %v68 = vld [vmem:[%s67] sm:$0x1]
    %69 = vst [vmem:[%s2 + $0x7] sm:$0x1] %v68
    // Predicated region
    $region18: #{_int_conditioner_forward.1} parent=1 // pred_check
      _
    $region19: #{_int_conditioner_forward.1} parent=1 // pred_check_branch
      %71 = sbr.rel (0) target = $region21
    $region20: #{_int_conditioner_forward.1} parent=1 // pred_region
      _
    $region21: #{_int_conditioner_forward.1} parent=1 // pred_fallthru
      _
    // Predicated region
    $region22: #{_int_conditioner_forward.1} parent=1 // pred_check
      _
    $region23: #{_int_conditioner_forward.1} parent=1 // pred_check_branch
      %73 = sbr.rel (0) target = $region25
    $region24: #{_int_conditioner_forward.1} parent=1 // pred_region
      _
    $region25: #{_int_conditioner_forward.1} parent=1 // pred_fallthru
      _
    %74 = vsyncpa [#allocation3], 1
    %75 = vsyncpa [#allocation4], 1

</llo_original>
